<compile_context>
chip_gen: v7x
topology: tpu7x:2x2x1
jax: 0.10.0
libtpu: 0.0.40
codegen_flags: <defaults>
</compile_context>

<pallas_src>
import jax
import jax.numpy as jnp
from jax.experimental import pallas as pl
from jax.experimental.pallas import tpu as pltpu


def _head_kernel(cls_ref, w_ref, b_ref, o_ref):
    # cls_ref: (tb, H)  CLS-token activations for this batch tile
    # w_ref:   (1, H)   folded weight  w_eff = fc2.weight @ fc1.weight
    # b_ref:   (1, 1)   folded bias    b_eff = fc1.bias @ fc2.weight.T + fc2.bias (SMEM)
    # o_ref:   (tb, 1)
    #
    # out = cls @ w_eff.T + b_eff  ==  fc2(fc1(cls)) under eval (dropout = id).
    prod = cls_ref[...].astype(jnp.float32) * w_ref[...]          # VPU, f32
    out = jnp.sum(prod, axis=-1, keepdims=True) + b_ref[0, 0]     # XLU lane reduce
    o_ref[...] = out.astype(o_ref.dtype)


def regression_head(last_hidden_states, w1, b1, w2, b2, *, tb=None):
    B, S, H = last_hidden_states.shape
    assert w1.shape == (H, H) and w2.shape == (1, H)

    # Only the CLS token feeds the head: slice before pallas_call so the kernel
    # never DMAs the (B, S, H) tensor.
    cls = last_hidden_states[:, 0, :]  # (B, H)

    # Fold the two linears (valid at inference: dropout is identity, no
    # nonlinearity between fc1 and fc2):
    #   fc2(fc1(x)) = x @ (w2 @ w1).T + (b1 @ w2.T + b2)
    w1f = w1.astype(jnp.float32)
    b1f = b1.astype(jnp.float32)
    w2f = w2.astype(jnp.float32)
    b2f = b2.astype(jnp.float32)
    w_eff = w2f @ w1f                                   # (1, H)
    b_eff = (b1f @ w2f.T + b2f).reshape(1, 1)           # (1, 1)

    # Batch tile: sublane-aligned, capped at 256 (fills vregs, keeps step
    # count low; VMEM footprint is tiny since no (H, H) weight is resident).
    if tb is None:
        tb = min(256, max(8, pl.cdiv(B, 8) * 8))
    B_pad = pl.cdiv(B, tb) * tb
    if B_pad != B:
        cls = jnp.pad(cls, ((0, B_pad - B), (0, 0)))

    out = pl.pallas_call(
        _head_kernel,
        out_shape=jax.ShapeDtypeStruct((B_pad, 1), jnp.float32),
        grid=(B_pad // tb,),
        in_specs=[
            pl.BlockSpec((tb, H), lambda i: (i, 0)),             # cls, batch-tiled
            pl.BlockSpec((1, H), lambda i: (0, 0)),              # folded weight, resident
            pl.BlockSpec(memory_space=pltpu.MemorySpace.SMEM),   # folded bias scalar
        ],
        out_specs=pl.BlockSpec((tb, 1), lambda i: (i, 0)),
        compiler_params=pltpu.CompilerParams(
            dimension_semantics=("parallel",),   # batch tiles shard across TCs (v7x)
        ),
    )(cls, w_eff, b_eff)

    return out[:B]


def reference_head(last_hidden_states, w1, b1, w2, b2):
    # Unfused reference: exactly the PyTorch head at eval.
    cls = last_hidden_states[:, 0, :]
    h = cls @ w1.T + b1
    return h @ w2.T + b2


if __name__ == "__main__":
    # Small shapes consistent with the forward: batch=12 (not a multiple of 8,
    # exercises the padding path), seq=8, hidden=128.
    B, S, H = 12, 8, 128

    key = jax.random.PRNGKey(0)
    kx, kw1, kb1, kw2, kb2 = jax.random.split(key, 5)

    last_hidden_states = jax.random.normal(kx, (B, S, H), dtype=jnp.float32)

    # Deterministic PyTorch-Linear-style init: U(-1/sqrt(fan_in), 1/sqrt(fan_in)).
    bound1 = 1.0 / (H ** 0.5)
    w1 = jax.random.uniform(kw1, (H, H), jnp.float32, -bound1, bound1)
    b1 = jax.random.uniform(kb1, (H,), jnp.float32, -bound1, bound1)
    w2 = jax.random.uniform(kw2, (1, H), jnp.float32, -bound1, bound1)
    b2 = jax.random.uniform(kb2, (1,), jnp.float32, -bound1, bound1)

    out = regression_head(last_hidden_states, w1, b1, w2, b2)
    out = jax.block_until_ready(out)

    ref = reference_head(last_hidden_states, w1, b1, w2, b2)
    assert out.shape == (B, 1), out.shape
    assert jnp.allclose(out, ref, atol=1e-4, rtol=1e-4), (out, ref)

    print("KERNEL_OK")
</pallas_src>

<mosaic_0001>
module attributes {stable_mosaic.version = 11 : i64} {
  func.func @_head_kernel(%arg0: i32, %arg1: memref<16x128xf32, #tpu.memory_space<vmem>>, %arg2: memref<1x128xf32, #tpu.memory_space<vmem>>, %arg3: memref<1x1xf32, #tpu.memory_space<smem>>, %arg4: memref<16x1xf32, #tpu.memory_space<vmem>>) attributes {dimension_semantics = [#tpu.dimension_semantics<parallel>], iteration_bounds = array<i64: 1>, scalar_prefetch = 0 : i64, scratch_operands = 0 : i64, tpu.core_type = #tpu.core_type<tc>, window_params = [{transform_indices = @transform_0, window_bounds = array<i64: 16, 128>}, {pipeline_mode = #tpu.pipeline_mode<synchronous>, transform_indices = @transform_1, window_bounds = array<i64: 1, 128>}, {transform_indices = @transform_2, window_bounds = array<i64: 1, 1>}, {transform_indices = @transform_3, window_bounds = array<i64: 16, 1>}]} {
    %c0 = arith.constant 0 : index
    %c0_0 = arith.constant 0 : index
    %0 = vector.load %arg1[%c0, %c0_0] : memref<16x128xf32, #tpu.memory_space<vmem>>, vector<16x128xf32>
    %c0_1 = arith.constant 0 : index
    %c0_2 = arith.constant 0 : index
    %1 = vector.load %arg2[%c0_1, %c0_2] : memref<1x128xf32, #tpu.memory_space<vmem>>, vector<1x128xf32>
    %2 = vector.broadcast %1 : vector<1x128xf32> to vector<16x128xf32>
    %3 = arith.mulf %0, %2 : vector<16x128xf32>
    %cst = arith.constant dense<0.000000e+00> : vector<16xf32>
    %4 = vector.multi_reduction <add>, %3, %cst [1] : vector<16x128xf32> to vector<16xf32>
    %5 = vector.shape_cast %4 : vector<16xf32> to vector<16x1xf32>
    %c0_3 = arith.constant 0 : index
    %c0_4 = arith.constant 0 : index
    %6 = memref.load %arg3[%c0_3, %c0_4] : memref<1x1xf32, #tpu.memory_space<smem>>
    %7 = vector.broadcast %6 : f32 to vector<16x1xf32>
    %8 = arith.addf %5, %7 : vector<16x1xf32>
    %c0_5 = arith.constant 0 : index
    %c0_6 = arith.constant 0 : index
    %9 = vector.load %arg4[%c0_5, %c0_6] : memref<16x1xf32, #tpu.memory_space<vmem>>, vector<16x1xf32>
    tpu.vector_store %arg4[%c0_5, %c0_6], %8 {strides = array<i32>} : memref<16x1xf32, #tpu.memory_space<vmem>>, vector<16x1xf32>,
    return
  }
  func.func @transform_0(%arg0: i32) -> (i32, i32) {
    %c0_i32 = arith.constant 0 : i32
    %c0_i32_0 = arith.constant 0 : i32
    return %arg0, %c0_i32 : i32, i32
  }
  func.func @transform_1(%arg0: i32) -> (i32, i32) {
    %c0_i32 = arith.constant 0 : i32
    %c0_i32_0 = arith.constant 0 : i32
    %c0_i32_1 = arith.constant 0 : i32
    return %c0_i32, %c0_i32_0 : i32, i32
  }
  func.func @transform_2(%arg0: i32) -> (i32, i32) {
    %c0_i32 = arith.constant 0 : i32
    %c0_i32_0 = arith.constant 0 : i32
    %c0_i32_1 = arith.constant 0 : i32
    return %c0_i32, %c0_i32_0 : i32, i32
  }
  func.func @transform_3(%arg0: i32) -> (i32, i32) {
    %c0_i32 = arith.constant 0 : i32
    %c0_i32_0 = arith.constant 0 : i32
    return %arg0, %c0_i32 : i32, i32
  }
}

</mosaic_0001>

<llo_original>
// kernel: tpu_custom_call.1
$region0: #{tpu_custom_call.1}
  #allocation0 [shape = 'u32[]', space=smem, size = 0x4, offset = 0x4, fixed_abs, tag = 'smem constant byte address 0x4 - core index']
  #allocation1 [shape = 'u32[144,128]{1,0:T(1,128)}', space=vmem, size = 0x12000, scoped, tag = 'internal scratch']
  #allocation2 [shape = 'f32[1,1]{1,0:T(1,128)S(6)}', space=smem, size = 0x200, scoped, tag = 'scoped memory for tpu_custom_call.1']
  %s0 = inlined_call_operand.hbm [shape: f32[16,128], index: 0, kind: input, shape index: {}]
  %s1 = inlined_call_operand.vmem [shape: f32[1,128], index: 1, kind: input, shape index: {}]
  %s2 = inlined_call_operand.<no memory space> [shape: f32[1,1], index: 2, kind: input, shape index: {}]
  %s3 = inlined_call_operand.vmem [shape: f32[16,1], index: 3, kind: output, shape index: {}]
  %s4 = sld [smem:[#allocation0]]
  $region26: #{tpu_custom_call.1} parent=0
    _
  %s6 = ssub.s32 1, %s4
  %s7 = scalar_select 0, %s6, %s4
  %8 = sst [smem:[#allocation2]] %s2
  $region1: #{tpu_custom_call.1} parent=0
    #allocation3 [shape = 'u8[8192]{0}', space=vmem, size = 0x2000, scoped, tag = 'input window, operand 0, single buffered']
    #allocation4 [shape = 's32[1]{0}', space=sflag, size = 0x4, scoped, tag = 'scoped memory for tpu_custom_call.1']
    %9 = vsyncpa [#allocation4], 0
    // Predicated region
    $region2: #{tpu_custom_call.1} parent=1 // pred_check
      _
    $region3: #{tpu_custom_call.1} parent=1 // pred_check_branch
      %11 = sbr.rel (0) target = $region5
    $region4: #{tpu_custom_call.1} parent=1 // pred_region
      %s13 = ssub.s32 256, 256
      %14 = vsyncadd [#allocation4], %s13
      %s15 = sshll.u32 [#allocation3], 4
      %s16 = int_to_ptr.vmem [resolvable:$true] %s15
      %21 = dma.hbm_to_vmem [thread:$0]  %s0, 256, %s16, [#allocation4], 128, 128, 8
    $region5: #{tpu_custom_call.1} parent=1 // pred_fallthru
      _
    // Predicated region
    $region6: #{tpu_custom_call.1} parent=1 // pred_check
      _
    $region7: #{tpu_custom_call.1} parent=1 // pred_check_branch
      %23 = sbr.rel (0) target = $region9
    $region8: #{tpu_custom_call.1} parent=1 // pred_region
      _
    $region9: #{tpu_custom_call.1} parent=1 // pred_fallthru
      _
    // Predicated region
    $region10: #{tpu_custom_call.1} parent=1 // pred_check
      _
    $region11: #{tpu_custom_call.1} parent=1 // pred_check_branch
      %25 = sbr.rel (0) target = $region13
    $region12: #{tpu_custom_call.1} parent=1 // pred_region
      _
    $region13: #{tpu_custom_call.1} parent=1 // pred_fallthru
      _
    // Predicated region
    $region14: #{tpu_custom_call.1} parent=1 // pred_check
      _
    $region15: #{tpu_custom_call.1} parent=1 // pred_check_branch
      %27 = sbr.rel (0) target = $region17
    $region16: #{tpu_custom_call.1} parent=1 // pred_region
      %28 = dma.done [#allocation4], 256
    $region17: #{tpu_custom_call.1} parent=1 // pred_fallthru
      _
    %v29 = vld [vmem:[#allocation3] sm:$0xff]
    %v30 = vld [vmem:[#allocation3 + $0x8] sm:$0xff]
    %v31 = vld [vmem:[%s1] sm:$0x1]
    %v33 = vlaneseq
    %v34 = vshrl.u32 %v33, 7
    %v35 = vsub.s32 0, %v34
    %v36 = vrot.slane %v31, %v35
    %v38 = vmul.f32 %v29, %v36
    %v39 = vmul.f32 %v30, %v36
    %40 = vadd.xlane.f32.xlu0 %v38
    %v41 = vpop.xlane.xlu0 %40
    %42 = vadd.xlane.f32.xlu0 %v39
    %v43 = vpop.xlane.xlu0 %42
    %s44 = sld [smem:[#allocation2]]
    %v45 = vstv %s44
    %v46 = vadd.f32 %v41, %v45
    %v47 = vadd.f32 %v43, %v45
    %vm48 = vcmask 7168
    %49 = vst.msk [vmem:[%s3] sm:$0xff] %vm48, %v46
    %50 = vst.msk [vmem:[%s3 + $0x8] sm:$0xff] %vm48, %v47
    // Predicated region
    $region18: #{tpu_custom_call.1} parent=1 // pred_check
      _
    $region19: #{tpu_custom_call.1} parent=1 // pred_check_branch
      %52 = sbr.rel (0) target = $region21
    $region20: #{tpu_custom_call.1} parent=1 // pred_region
      _
    $region21: #{tpu_custom_call.1} parent=1 // pred_fallthru
      _
    // Predicated region
    $region22: #{tpu_custom_call.1} parent=1 // pred_check
      _
    $region23: #{tpu_custom_call.1} parent=1 // pred_check_branch
      %54 = sbr.rel (0) target = $region25
    $region24: #{tpu_custom_call.1} parent=1 // pred_region
      _
    $region25: #{tpu_custom_call.1} parent=1 // pred_fallthru
      _
    %55 = vsyncpa [#allocation4], 1

</llo_original>
